<compile_context>
chip_gen: v7x
topology: tpu7x:2x2x1
jax: 0.10.0
libtpu: 0.0.40
codegen_flags: <defaults>
</compile_context>

<pallas_src>
import functools

import jax
import jax.numpy as jnp
from jax import lax
from jax.experimental import pallas as pl
from jax.experimental.pallas import tpu as pltpu


def _round_up(x, m):
    return ((x + m - 1) // m) * m


def _int_power(h, k):
    """h ** k for a static non-negative Python int k, via exp-by-squaring."""
    if k == 0:
        return jnp.ones_like(h)          # matches torch semantics of x ** 0
    result = None
    base = h
    e = k
    while e > 0:
        if e & 1:
            result = base if result is None else result * base
        e >>= 1
        if e:
            base = base * base
    return result


def _relu_k_mlp_kernel(k, x_ref, w1_ref, b1_ref, w2_ref, o_ref):
    """Fused  fc2( relu(fc1(x)) ** k )  on one VMEM-resident tile.

    Lane-dense layout: batch is the last (lane) axis of every intermediate.

    x_ref  : (tile_b, in_dim)          float32
    w1_ref : (hidden, in_dim)          float32  (PyTorch nn.Linear layout)
    b1_ref : (hidden, 1)               float32
    w2_ref : (num_classes, hidden)     float32  (bias=False)
    o_ref  : (num_classes, tile_b)     float32
    """
    # fc1: (hidden, in_dim) x (tile_b, in_dim) -> (hidden, tile_b)
    #   == (x @ W1.T).T  -- the MXU consumes the transposed operand for free.
    h = lax.dot_general(
        w1_ref[...], x_ref[...],
        dimension_numbers=(((1,), (1,)), ((), ())),
        preferred_element_type=jnp.float32,
    )
    h = h + b1_ref[...]          # (hidden, 1) broadcasts across the batch lanes
    h = jnp.maximum(h, 0.0)      # ReLU, full 128-lane occupancy

    # ReLU^k with k a *static* Python int -> ceil(log2 k) dependent VPU muls.
    hk = _int_power(h, k)

    # fc2 (no bias): (num_classes, hidden) x (hidden, tile_b) -> (num_classes, tile_b)
    # Lane-dense output -> unmasked vector stores.
    o_ref[...] = lax.dot_general(
        w2_ref[...], hk,
        dimension_numbers=(((1,), (0,)), ((), ())),
        preferred_element_type=jnp.float32,
    )


def relu_k_mlp(x, w1, b1, w2, k=1, *, max_batch_tile=2048):
    """Forward pass of the ReLU^k shallow network as a single fused Pallas kernel.

    x  : [B, input_size]        float32
    w1 : [hidden, input_size]   float32   (PyTorch nn.Linear weight layout)
    b1 : [hidden]               float32
    w2 : [num_classes, hidden]  float32   (bias=False)
    returns [B, num_classes]    float32
    """
    B, in_dim = x.shape
    hidden = w1.shape[0]
    num_classes = w2.shape[0]

    # Cheap layout-only reshape (no data movement): bias as a (hidden, 1) column.
    b1r = b1.reshape(hidden, 1)

    kernel = functools.partial(_relu_k_mlp_kernel, int(k))

    if B <= max_batch_tile:
        # Small / latency-bound case: no grid, no pipeline machinery.  Everything
        # is a whole-array VMEM block for the single fused invocation.
        # TODO(synk): at this size the call is dispatch-latency bound; amortize by
        # batching requests or keeping weights resident across calls if invoked
        # repeatedly.
        out = pl.pallas_call(
            kernel,
            out_shape=jax.ShapeDtypeStruct((num_classes, B), jnp.float32),
            in_specs=[pl.BlockSpec(memory_space=pltpu.MemorySpace.VMEM)] * 4,
            out_specs=pl.BlockSpec(memory_space=pltpu.MemorySpace.VMEM),
        )(x, w1, b1r, w2)
    else:
        # Batch-tiled path: big tiles to amortize per-step overhead, but always
        # >= 2 grid steps so the "parallel" axis can shard across the two
        # TensorCores on v7x (no-op on single-TC v5e/v6e).
        tile = min(max_batch_tile, _round_up(pl.cdiv(B, 2), 128))
        b_pad = _round_up(B, tile)
        x_in = jnp.pad(x, ((0, b_pad - B), (0, 0))) if b_pad != B else x
        grid = (b_pad // tile,)

        out = pl.pallas_call(
            kernel,
            out_shape=jax.ShapeDtypeStruct((num_classes, b_pad), jnp.float32),
            grid=grid,
            in_specs=[
                pl.BlockSpec((tile, in_dim), lambda i: (i, 0)),
                # Weights / bias: constant index_map -> grid-invariant blocks,
                # loaded once; no per-step pipelining needed for them.
                pl.BlockSpec((hidden, in_dim), lambda i: (0, 0)),
                pl.BlockSpec((hidden, 1), lambda i: (0, 0)),
                pl.BlockSpec((num_classes, hidden), lambda i: (0, 0)),
            ],
            out_specs=pl.BlockSpec((num_classes, tile), lambda i: (0, i)),
            compiler_params=pltpu.CompilerParams(
                dimension_semantics=("parallel",)),
        )(x_in, w1, b1r, w2)
        out = out[:, :B]

    # (num_classes, B) -> (B, num_classes).  For num_classes == 1 this is a
    # pure reshape (free); otherwise a cheap XLA transpose outside the kernel.
    if num_classes == 1:
        return out.reshape(B, num_classes)
    return jnp.transpose(out)


def _reference(x, w1, b1, w2, k=1):
    h = jnp.maximum(x @ w1.T + b1, 0.0) ** k
    return h @ w2.T


if __name__ == "__main__":
    # Shapes consistent with the module: 10-d input (OGA 10d), 32 hidden
    # neurons, 1 output class, relu degree k=2.
    input_size, hidden_size1, num_classes, k = 10, 32, 1, 2

    key = jax.random.PRNGKey(0)
    kx, kw1, kb1, kw2, kx2 = jax.random.split(key, 5)

    w1 = jax.random.normal(kw1, (hidden_size1, input_size), dtype=jnp.float32) * 0.1
    b1 = jax.random.normal(kb1, (hidden_size1,), dtype=jnp.float32) * 0.1
    w2 = jax.random.normal(kw2, (num_classes, hidden_size1), dtype=jnp.float32) * 0.1

    # --- small batch: exercises the no-grid, single-VMEM-block path ---
    batch = 8
    x = jax.random.normal(kx, (batch, input_size), dtype=jnp.float32)
    out = jax.block_until_ready(relu_k_mlp(x, w1, b1, w2, k=k))
    ref = _reference(x, w1, b1, w2, k=k)
    assert out.shape == (batch, num_classes)
    assert jnp.allclose(out, ref, atol=1e-5, rtol=1e-5), "small-batch mismatch"

    # --- larger, non-multiple batch: exercises the tiled ("parallel") path
    #     with tail padding (max_batch_tile lowered so the test stays small) ---
    big_batch = 1000
    x_big = jax.random.normal(kx2, (big_batch, input_size), dtype=jnp.float32)
    out_big = jax.block_until_ready(
        relu_k_mlp(x_big, w1, b1, w2, k=k, max_batch_tile=256))
    ref_big = _reference(x_big, w1, b1, w2, k=k)
    assert out_big.shape == (big_batch, num_classes)
    assert jnp.allclose(out_big, ref_big, atol=1e-5, rtol=1e-5), "tiled-batch mismatch"

    print("KERNEL_OK")
</pallas_src>

<mosaic_0001>
module attributes {stable_mosaic.version = 11 : i64} {
  func.func @_relu_k_mlp_kernel(%arg0: memref<8x10xf32, #tpu.memory_space<vmem>>, %arg1: memref<32x10xf32, #tpu.memory_space<vmem>>, %arg2: memref<32x1xf32, #tpu.memory_space<vmem>>, %arg3: memref<1x32xf32, #tpu.memory_space<vmem>>, %arg4: memref<1x8xf32, #tpu.memory_space<vmem>>) attributes {dimension_semantics = [], scalar_prefetch = 0 : i64, scratch_operands = 0 : i64, tpu.core_type = #tpu.core_type<tc>} {
    %c0 = arith.constant 0 : index
    %c0_0 = arith.constant 0 : index
    %0 = vector.load %arg1[%c0, %c0_0] : memref<32x10xf32, #tpu.memory_space<vmem>>, vector<32x10xf32>
    %c0_1 = arith.constant 0 : index
    %c0_2 = arith.constant 0 : index
    %1 = vector.load %arg0[%c0_1, %c0_2] : memref<8x10xf32, #tpu.memory_space<vmem>>, vector<8x10xf32>
    %cst = arith.constant dense<0.000000e+00> : vector<32x8xf32>
    %2 = tpu.matmul %0, %1, %cst {dimension_numbers = #tpu.dot_dimension_numbers<[1], [1], [0], [0], [0, 0, 1, 0], [], []>} : vector<32x10xf32>, vector<8x10xf32>, vector<32x8xf32> -> vector<32x8xf32>
    %c0_3 = arith.constant 0 : index
    %c0_4 = arith.constant 0 : index
    %3 = vector.load %arg2[%c0_3, %c0_4] : memref<32x1xf32, #tpu.memory_space<vmem>>, vector<32x1xf32>
    %4 = vector.broadcast %3 : vector<32x1xf32> to vector<32x8xf32>
    %5 = arith.addf %2, %4 : vector<32x8xf32>
    %cst_5 = arith.constant 0.000000e+00 : f32
    %6 = vector.broadcast %cst_5 : f32 to vector<32x8xf32>
    %7 = arith.maximumf %5, %6 : vector<32x8xf32>
    %8 = arith.mulf %7, %7 : vector<32x8xf32>
    %c0_6 = arith.constant 0 : index
    %c0_7 = arith.constant 0 : index
    %9 = vector.load %arg3[%c0_6, %c0_7] : memref<1x32xf32, #tpu.memory_space<vmem>>, vector<1x32xf32>
    %cst_8 = arith.constant dense<0.000000e+00> : vector<1x8xf32>
    %10 = tpu.matmul %9, %8, %cst_8 {dimension_numbers = #tpu.dot_dimension_numbers<[1], [0], [0], [1], [0, 0, 1, 1], [], []>} : vector<1x32xf32>, vector<32x8xf32>, vector<1x8xf32> -> vector<1x8xf32>
    %c0_9 = arith.constant 0 : index
    %c0_10 = arith.constant 0 : index
    %11 = vector.load %arg4[%c0_9, %c0_10] : memref<1x8xf32, #tpu.memory_space<vmem>>, vector<1x8xf32>
    tpu.vector_store %arg4[%c0_9, %c0_10], %10 {strides = array<i32>} : memref<1x8xf32, #tpu.memory_space<vmem>>, vector<1x8xf32>,
    return
  }
}

</mosaic_0001>

<llo_original>
// kernel: tpu_custom_call.1
$region0: #{tpu_custom_call.1}
  #allocation0 [shape = 'u32[]', space=smem, size = 0x4, offset = 0x4, fixed_abs, tag = 'smem constant byte address 0x4 - core index']
  #allocation1 [shape = 'u32[144,128]{1,0:T(1,128)}', space=vmem, size = 0x12000, scoped, tag = 'internal scratch']
  %s0 = inlined_call_operand.vmem [shape: f32[8,10], index: 0, kind: input, shape index: {}]
  %s1 = inlined_call_operand.vmem [shape: f32[32,10], index: 1, kind: input, shape index: {}]
  %s2 = inlined_call_operand.vmem [shape: f32[32,1], index: 2, kind: input, shape index: {}]
  %s3 = inlined_call_operand.vmem [shape: f32[1,32], index: 3, kind: input, shape index: {}]
  %s4 = inlined_call_operand.hbm [shape: f32[1,8], index: 4, kind: output, shape index: {}]
  %s5 = sld [smem:[#allocation0]]
  $region26: #{tpu_custom_call.1} parent=0
    _
  %s7 = ssub.s32 1, %s5
  %s8 = scalar_select 0, %s7, %s5
  $region1: #{tpu_custom_call.1} parent=0
    #allocation2 [shape = 'u8[512]{0}', space=vmem, size = 0x400, scoped, tag = 'output window, operand 0, single buffered']
    #allocation3 [shape = 's32[1]{0}', space=sflag, size = 0x4, scoped, tag = 'scoped memory for tpu_custom_call.1']
    %9 = vsyncpa [#allocation3], 0
    // Predicated region
    $region2: #{tpu_custom_call.1} parent=1 // pred_check
      _
    $region3: #{tpu_custom_call.1} parent=1 // pred_check_branch
      %11 = sbr.rel (0) target = $region5
    $region4: #{tpu_custom_call.1} parent=1 // pred_region
      _
    $region5: #{tpu_custom_call.1} parent=1 // pred_fallthru
      _
    // Predicated region
    $region6: #{tpu_custom_call.1} parent=1 // pred_check
      _
    $region7: #{tpu_custom_call.1} parent=1 // pred_check_branch
      %13 = sbr.rel (0) target = $region9
    $region8: #{tpu_custom_call.1} parent=1 // pred_region
      _
    $region9: #{tpu_custom_call.1} parent=1 // pred_fallthru
      _
    // Predicated region
    $region10: #{tpu_custom_call.1} parent=1 // pred_check
      _
    $region11: #{tpu_custom_call.1} parent=1 // pred_check_branch
      %15 = sbr.rel (0) target = $region13
    $region12: #{tpu_custom_call.1} parent=1 // pred_region
      _
    $region13: #{tpu_custom_call.1} parent=1 // pred_fallthru
      _
    // Predicated region
    $region14: #{tpu_custom_call.1} parent=1 // pred_check
      _
    $region15: #{tpu_custom_call.1} parent=1 // pred_check_branch
      %17 = sbr.rel (0) target = $region17
    $region16: #{tpu_custom_call.1} parent=1 // pred_region
      _
    $region17: #{tpu_custom_call.1} parent=1 // pred_fallthru
      _
    %v18 = vld [vmem:[%s1] sm:$0xff]
    %v19 = vld [vmem:[%s1 + $0x8] sm:$0xff]
    %v20 = vld [vmem:[%s1 + $0x10] sm:$0xff]
    %v21 = vld [vmem:[%s1 + $0x18] sm:$0xff]
    %v22 = vld [vmem:[%s0] sm:$0xff]
    %v23 = vld [vmem:[%s2] sm:$0xff]
    %v24 = vld [vmem:[%s2 + $0x8] sm:$0xff]
    %v25 = vld [vmem:[%s2 + $0x10] sm:$0xff]
    %v26 = vld [vmem:[%s2 + $0x18] sm:$0xff]
    %28 = vset.pattern.permute.xlu0 0
    %29 = vperm.xlu0 %28, %v23
    %v30 = vpop.permute.xlu0 %29
    %33 = vset.pattern.permute.xlu0 0
    %34 = vperm.xlu0 %33, %v24
    %v35 = vpop.permute.xlu0 %34
    %38 = vset.pattern.permute.xlu0 0
    %39 = vperm.xlu0 %38, %v25
    %v40 = vpop.permute.xlu0 %39
    %43 = vset.pattern.permute.xlu0 0
    %44 = vperm.xlu0 %43, %v26
    %v45 = vpop.permute.xlu0 %44
    %vm47 = vcmask 80896
    %v49 = vsel %vm47, %v18, 0
    %v52 = vsel %vm47, %v19, 0
    %v55 = vsel %vm47, %v20, 0
    %v58 = vsel %vm47, %v21, 0
    %v61 = vsel %vm47, %v22, 0
    %63 = vmatprep.subr.mxu0 0.0
    %64 = vmatpush1.xpose.msra.mxu0 %v61
    %65 = vmatprep.subr.mxu0 0.0
    %66 = vmatpush1.xpose.msra.mxu0 0.0
    %67 = vmatprep.subr.mxu0 0.0
    %68 = vmatpush1.xpose.msra.mxu0 0.0
    %69 = vmatprep.subr.mxu0 0.0
    %70 = vmatpush1.xpose.msra.mxu0 0.0
    %71 = vmatprep.subr.mxu0 0.0
    %72 = vmatpush1.xpose.msra.mxu0 0.0
    %73 = vmatprep.subr.mxu0 0.0
    %74 = vmatpush1.xpose.msra.mxu0 0.0
    %75 = vmatprep.subr.mxu0 0.0
    %76 = vmatpush1.xpose.msra.mxu0 0.0
    %77 = vmatprep.subr.mxu0 0.0
    %78 = vmatpush1.xpose.msra.mxu0 0.0
    %79 = vmatprep.subr.mxu0 0.0
    %80 = vmatpush1.xpose.msra.mxu0 0.0
    %81 = vmatprep.subr.mxu0 0.0
    %82 = vmatpush1.xpose.msra.mxu0 0.0
    %83 = vmatprep.subr.mxu0 0.0
    %84 = vmatpush1.xpose.msra.mxu0 0.0
    %85 = vmatprep.subr.mxu0 0.0
    %86 = vmatpush1.xpose.msra.mxu0 0.0
    %87 = vmatprep.subr.mxu0 0.0
    %88 = vmatpush1.xpose.msra.mxu0 0.0
    %89 = vmatprep.subr.mxu0 0.0
    %90 = vmatpush1.xpose.msra.mxu0 0.0
    %91 = vmatprep.subr.mxu0 0.0
    %92 = vmatpush1.xpose.msra.mxu0 0.0
    %93 = vmatprep.subr.mxu0 0.0
    %94 = vmatpush1.xpose.msra.mxu0 0.0
    %95 = vmatprep.subr.mxu0 0.0
    %96 = vmatpush1.xpose.msra.mxu0 0.0
    %97 = vmatprep.subr.mxu0 0.0
    %98 = vmatpush1.xpose.msra.mxu0 0.0
    %99 = vmatprep.subr.mxu0 0.0
    %100 = vmatpush1.xpose.msra.mxu0 0.0
    %101 = vmatprep.subr.mxu0 0.0
    %102 = vmatpush1.xpose.msra.mxu0 0.0
    %103 = vmatprep.subr.mxu0 0.0
    %104 = vmatpush1.xpose.msra.mxu0 0.0
    %105 = vmatprep.subr.mxu0 0.0
    %106 = vmatpush1.xpose.msra.mxu0 0.0
    %107 = vmatprep.subr.mxu0 0.0
    %108 = vmatpush1.xpose.msra.mxu0 0.0
    %109 = vmatprep.subr.mxu0 0.0
    %110 = vmatpush1.xpose.msra.mxu0 0.0
    %111 = vmatprep.subr.mxu0 0.0
    %112 = vmatpush1.xpose.msra.mxu0 0.0
    %113 = vmatprep.subr.mxu0 0.0
    %114 = vmatpush1.xpose.msra.mxu0 0.0
    %115 = vmatprep.subr.mxu0 0.0
    %116 = vmatpush1.xpose.msra.mxu0 0.0
    %117 = vmatprep.subr.mxu0 0.0
    %118 = vmatpush1.xpose.msra.mxu0 0.0
    %119 = vmatprep.subr.mxu0 0.0
    %120 = vmatpush1.xpose.msra.mxu0 0.0
    %121 = vmatprep.subr.mxu0 0.0
    %122 = vmatpush1.xpose.msra.mxu0 0.0
    %123 = vmatprep.subr.mxu0 0.0
    %124 = vmatpush1.xpose.msra.mxu0 0.0
    %125 = vmatprep.subr.mxu0 0.0
    %126 = vmatpush1.xpose.msra.mxu0 0.0
    %127 = vmatprep.mubr.f32.mxu0 0.0
    %128 = vmatmul.mubr.f32.gmra.mrb[0].mxu0 %v49
    %v129 = vpop.f32.mrb[0].mxu0
    %v130 = vadd.f32 %v30, %v129
    %v131 = vpop.f32.mrb[0].mxu0
    %132 = vmatprep.mubr.f32.mxu0 0.0
    %133 = vmatmul.mubr.f32.gmra.mrb[0].mxu0 %v52
    %v134 = vpop.f32.mrb[0].mxu0
    %v135 = vadd.f32 %v35, %v134
    %v136 = vpop.f32.mrb[0].mxu0
    %137 = vmatprep.mubr.f32.mxu0 0.0
    %138 = vmatmul.mubr.f32.gmra.mrb[0].mxu0 %v55
    %v139 = vpop.f32.mrb[0].mxu0
    %v140 = vadd.f32 %v40, %v139
    %v141 = vpop.f32.mrb[0].mxu0
    %142 = vmatprep.mubr.f32.mxu0 0.0
    %143 = vmatmul.mubr.f32.gmra.mrb[0].mxu0 %v58
    %v144 = vpop.f32.mrb[0].mxu0
    %v145 = vadd.f32 %v45, %v144
    %v146 = vpop.f32.mrb[0].mxu0
    %147 = vdwg.mxu0
    %v148 = vmax.f32 %v130, 0.0
    %v149 = vmax.f32 %v135, 0.0
    %v150 = vmax.f32 %v140, 0.0
    %v151 = vmax.f32 %v145, 0.0
    %v152 = vmul.f32 %v148, %v148
    %v153 = vmul.f32 %v149, %v149
    %v154 = vmul.f32 %v150, %v150
    %v155 = vmul.f32 %v151, %v151
    %v156 = vld [vmem:[%s3] sm:$0x1]
    %vm157 = vcmask 261120
    %v159 = vsel %vm157, %v156, 0
    %161 = vmatprep.subr.mxu0 0.0
    %162 = vmatpush1.msra.mxu0 %v152
    %163 = vmatprep.subr.mxu0 0.0
    %164 = vmatpush1.msra.mxu0 %v153
    %165 = vmatprep.subr.mxu0 0.0
    %166 = vmatpush1.msra.mxu0 %v154
    %167 = vmatprep.subr.mxu0 0.0
    %168 = vmatpush1.msra.mxu0 %v155
    %169 = vmatprep.subr.mxu0 0.0
    %170 = vmatpush1.msra.mxu0 0.0
    %171 = vmatprep.subr.mxu0 0.0
    %172 = vmatpush1.msra.mxu0 0.0
    %173 = vmatprep.subr.mxu0 0.0
    %174 = vmatpush1.msra.mxu0 0.0
    %175 = vmatprep.subr.mxu0 0.0
    %176 = vmatpush1.msra.mxu0 0.0
    %177 = vmatprep.subr.mxu0 0.0
    %178 = vmatpush1.msra.mxu0 0.0
    %179 = vmatprep.subr.mxu0 0.0
    %180 = vmatpush1.msra.mxu0 0.0
    %181 = vmatprep.subr.mxu0 0.0
    %182 = vmatpush1.msra.mxu0 0.0
    %183 = vmatprep.subr.mxu0 0.0
    %184 = vmatpush1.msra.mxu0 0.0
    %185 = vmatprep.subr.mxu0 0.0
    %186 = vmatpush1.msra.mxu0 0.0
    %187 = vmatprep.subr.mxu0 0.0
    %188 = vmatpush1.msra.mxu0 0.0
    %189 = vmatprep.subr.mxu0 0.0
    %190 = vmatpush1.msra.mxu0 0.0
    %191 = vmatprep.subr.mxu0 0.0
    %192 = vmatpush1.msra.mxu0 0.0
    %193 = vmatprep.subr.mxu0 0.0
    %194 = vmatpush1.msra.mxu0 0.0
    %195 = vmatprep.subr.mxu0 0.0
    %196 = vmatpush1.msra.mxu0 0.0
    %197 = vmatprep.subr.mxu0 0.0
    %198 = vmatpush1.msra.mxu0 0.0
    %199 = vmatprep.subr.mxu0 0.0
    %200 = vmatpush1.msra.mxu0 0.0
    %201 = vmatprep.subr.mxu0 0.0
    %202 = vmatpush1.msra.mxu0 0.0
    %203 = vmatprep.subr.mxu0 0.0
    %204 = vmatpush1.msra.mxu0 0.0
    %205 = vmatprep.subr.mxu0 0.0
    %206 = vmatpush1.msra.mxu0 0.0
    %207 = vmatprep.subr.mxu0 0.0
    %208 = vmatpush1.msra.mxu0 0.0
    %209 = vmatprep.subr.mxu0 0.0
    %210 = vmatpush1.msra.mxu0 0.0
    %211 = vmatprep.subr.mxu0 0.0
    %212 = vmatpush1.msra.mxu0 0.0
    %213 = vmatprep.subr.mxu0 0.0
    %214 = vmatpush1.msra.mxu0 0.0
    %215 = vmatprep.subr.mxu0 0.0
    %216 = vmatpush1.msra.mxu0 0.0
    %217 = vmatprep.subr.mxu0 0.0
    %218 = vmatpush1.msra.mxu0 0.0
    %219 = vmatprep.subr.mxu0 0.0
    %220 = vmatpush1.msra.mxu0 0.0
    %221 = vmatprep.subr.mxu0 0.0
    %222 = vmatpush1.msra.mxu0 0.0
    %223 = vmatprep.subr.mxu0 0.0
    %224 = vmatpush1.msra.mxu0 0.0
    %225 = vmatprep.mubr.f32.mxu0 0.0
    %226 = vmatmul.mubr.f32.gmra.mrb[0].mxu0 %v159
    %v227 = vpop.f32.mrb[0].mxu0
    %v228 = vadd.f32 0.0, %v227
    %v229 = vpop.f32.mrb[0].mxu0
    %230 = vdwg.mxu0
    %vm231 = vcmask 57344
    %232 = vst.msk [vmem:[#allocation2] sm:$0x1] %vm231, %v228
    // Predicated region
    $region18: #{tpu_custom_call.1} parent=1 // pred_check
      _
    $region19: #{tpu_custom_call.1} parent=1 // pred_check_branch
      %234 = sbr.rel (0) target = $region21
    $region20: #{tpu_custom_call.1} parent=1 // pred_region
      %s236 = ssub.s32 16, 16
      %237 = vsyncadd [#allocation3], %s236
      %s239 = sshll.u32 [#allocation2], 4
      %s240 = int_to_ptr.vmem [resolvable:$true] %s239
      %242 = dma.vmem_to_hbm [thread:$0]  %s240, 16, %s4, [#allocation3]
    $region21: #{tpu_custom_call.1} parent=1 // pred_fallthru
      _
    // Predicated region
    $region22: #{tpu_custom_call.1} parent=1 // pred_check
      _
    $region23: #{tpu_custom_call.1} parent=1 // pred_check_branch
      %244 = sbr.rel (0) target = $region25
    $region24: #{tpu_custom_call.1} parent=1 // pred_region
      %245 = dma.done [#allocation3], 16
    $region25: #{tpu_custom_call.1} parent=1 // pred_fallthru
      _
    %246 = vsyncpa [#allocation3], 1

</llo_original>
